<compile_context>
chip_gen: v7x
topology: tpu7x:2x2x1
jax: 0.10.0
libtpu: 0.0.40
codegen_flags: <defaults>
</compile_context>

<pallas_src>
import functools

import jax
import jax.numpy as jnp
from jax import lax
from jax.experimental import pallas as pl
from jax.experimental.pallas import tpu as pltpu

EPS = 1e-3


# ----------------------------------------------------------------------------
# Per-generation VMEM budgeting
# ----------------------------------------------------------------------------
@functools.lru_cache(maxsize=1)
def _vmem_limit_bytes():
    """Scoped VMEM limit: physical capacity minus headroom, capped at 96 MiB."""
    physical = 64 * 1024 * 1024  # conservative default (v7x per-TC VMEM)
    try:
        info = pltpu.get_tpu_info()
        for attr in ("vmem_capacity_bytes", "vmem_bytes", "vmem_size_bytes"):
            v = getattr(info, attr, None)
            if v:
                physical = int(v)
                break
    except Exception:
        pass
    return max(32 * 1024 * 1024, min(physical - 16 * 1024 * 1024, 96 * 1024 * 1024))


def _min_channel_tile(dtype):
    """Sublane-packing-aware minimum channel tile (f32:8, bf16:16, 8-bit:32)."""
    itemsize = jnp.dtype(dtype).itemsize
    return {4: 8, 2: 16, 1: 32}.get(itemsize, 8)


def _channel_tile_candidates(C, min_tc):
    """Divisors of C that are multiples of min_tc (ascending); fallback [C]."""
    cands = [d for d in range(min_tc, C + 1, min_tc) if C % d == 0]
    return cands if cands else [C]


# ----------------------------------------------------------------------------
# Single fused pass: whole (N, L) extent of a channel tile is VMEM resident.
# ----------------------------------------------------------------------------
def _br_fused_kernel(x_ref, g_ref, b_ref, a_ref, o_ref):
    x = x_ref[...].astype(jnp.float32)                              # (N, tc, L)
    inv_n = 1.0 / (x.shape[0] * x.shape[2])
    # sum / sum-of-squares over (N, L): cheap leading-axis adds + lane reduction.
    s = jnp.sum(jnp.sum(x, axis=0), axis=-1, keepdims=True)         # (tc, 1)
    sq = jnp.sum(jnp.sum(x * x, axis=0), axis=-1, keepdims=True)    # (tc, 1)
    mean = s * inv_n
    var = jnp.maximum(sq * inv_n - mean * mean, 0.0)                # biased, clamped
    inv_std = lax.rsqrt(var + EPS)
    scale = g_ref[...] * inv_std                                    # (tc, 1)
    bias = b_ref[...] - mean * scale
    y = x * scale[None] + bias[None]                                # fused norm+affine
    o_ref[...] = jnp.where(y >= 0.0, y, a_ref[...][None] * y).astype(o_ref.dtype)


def _br_single_pass(x3, g2, b2, a2, tc):
    N, C, L = x3.shape
    return pl.pallas_call(
        _br_fused_kernel,
        out_shape=jax.ShapeDtypeStruct((N, C, L), x3.dtype),
        grid_spec=pltpu.PrefetchScalarGridSpec(
            num_scalar_prefetch=0,
            grid=(C // tc,),
            in_specs=[
                pl.BlockSpec((N, tc, L), lambda c: (0, c, 0)),
                pl.BlockSpec((tc, 1), lambda c: (c, 0)),
                pl.BlockSpec((tc, 1), lambda c: (c, 0)),
                pl.BlockSpec((tc, 1), lambda c: (c, 0)),
            ],
            out_specs=pl.BlockSpec((N, tc, L), lambda c: (0, c, 0)),
        ),
        compiler_params=pltpu.CompilerParams(
            dimension_semantics=("parallel",),
            vmem_limit_bytes=_vmem_limit_bytes(),
        ),
    )(x3, g2, b2, a2)


# ----------------------------------------------------------------------------
# Two-phase path for large N*H*W: stats pass (reduction over spatial tiles),
# then a fully parallel normalize + PReLU pass.
# ----------------------------------------------------------------------------
def _br_stats_kernel(x_ref, g_ref, b_ref, scale_ref, bias_ref, sum_ref, sq_ref,
                     *, total_len, count, ragged):
    li = pl.program_id(1)
    nl = pl.num_programs(1)

    @pl.when(li == 0)
    def _init():
        sum_ref[...] = jnp.zeros_like(sum_ref)
        sq_ref[...] = jnp.zeros_like(sq_ref)

    x = x_ref[...].astype(jnp.float32)                              # (N, tc, tl)

    def _accumulate(xv):
        sum_ref[...] += jnp.sum(jnp.sum(xv, axis=0), axis=-1, keepdims=True)
        sq_ref[...] += jnp.sum(jnp.sum(xv * xv, axis=0), axis=-1, keepdims=True)

    if ragged:
        # Only the last spatial tile can be ragged; keep full tiles mask-free.
        @pl.when(li < nl - 1)
        def _full_tile():
            _accumulate(x)

        @pl.when(li == nl - 1)
        def _tail_tile():
            tl = x.shape[2]
            lane = lax.broadcasted_iota(jnp.int32, (1, 1, tl), 2) + li * tl
            _accumulate(jnp.where(lane < total_len, x, 0.0))
    else:
        _accumulate(x)

    @pl.when(li == nl - 1)
    def _finalize():
        inv_n = 1.0 / count
        mean = sum_ref[...] * inv_n
        var = jnp.maximum(sq_ref[...] * inv_n - mean * mean, 0.0)
        inv_std = lax.rsqrt(var + EPS)
        scale = g_ref[...] * inv_std
        scale_ref[...] = scale
        bias_ref[...] = b_ref[...] - mean * scale


def _br_apply_kernel(x_ref, scale_ref, bias_ref, a_ref, o_ref):
    # NOTE: for a ragged last spatial tile the OOB lanes compute garbage values
    # elementwise; Pallas drops the OOB part of the output store, so valid lanes
    # are unaffected.
    x = x_ref[...].astype(jnp.float32)                              # (N, tc, tl)
    y = x * scale_ref[...][None] + bias_ref[...][None]
    o_ref[...] = jnp.where(y >= 0.0, y, a_ref[...][None] * y).astype(o_ref.dtype)


def _pick_spatial_tile(N, tc, L, target_bytes):
    """Lane tile: multiple of 128, sized to ~target_bytes of f32 per x block."""
    if L <= 128:
        return L
    per_lane = N * tc * 4
    tl = max(128, (target_bytes // max(per_lane, 1)) // 128 * 128)
    return L if tl >= L else tl


def _br_two_pass(x3, g2, b2, a2, tc, tl_stats, tl_apply):
    N, C, L = x3.shape
    nc = C // tc
    vmem_limit = _vmem_limit_bytes()

    nl_s = pl.cdiv(L, tl_stats)
    stats_kernel = functools.partial(
        _br_stats_kernel, total_len=L, count=N * L, ragged=(L % tl_stats != 0))
    scale, bias = pl.pallas_call(
        stats_kernel,
        out_shape=(
            jax.ShapeDtypeStruct((C, 1), jnp.float32),
            jax.ShapeDtypeStruct((C, 1), jnp.float32),
        ),
        grid_spec=pltpu.PrefetchScalarGridSpec(
            num_scalar_prefetch=0,
            grid=(nc, nl_s),
            in_specs=[
                pl.BlockSpec((N, tc, tl_stats), lambda c, l: (0, c, l)),
                pl.BlockSpec((tc, 1), lambda c, l: (c, 0)),
                pl.BlockSpec((tc, 1), lambda c, l: (c, 0)),
            ],
            out_specs=(
                pl.BlockSpec((tc, 1), lambda c, l: (c, 0)),
                pl.BlockSpec((tc, 1), lambda c, l: (c, 0)),
            ),
            scratch_shapes=[
                pltpu.VMEM((tc, 1), jnp.float32),
                pltpu.VMEM((tc, 1), jnp.float32),
            ],
        ),
        compiler_params=pltpu.CompilerParams(
            dimension_semantics=("parallel", "arbitrary"),
            vmem_limit_bytes=vmem_limit,
        ),
    )(x3, g2, b2)

    nl_a = pl.cdiv(L, tl_apply)
    return pl.pallas_call(
        _br_apply_kernel,
        out_shape=jax.ShapeDtypeStruct((N, C, L), x3.dtype),
        grid_spec=pltpu.PrefetchScalarGridSpec(
            num_scalar_prefetch=0,
            grid=(nc, nl_a),
            in_specs=[
                pl.BlockSpec((N, tc, tl_apply), lambda c, l: (0, c, l)),
                pl.BlockSpec((tc, 1), lambda c, l: (c, 0)),
                pl.BlockSpec((tc, 1), lambda c, l: (c, 0)),
                pl.BlockSpec((tc, 1), lambda c, l: (c, 0)),
            ],
            out_specs=pl.BlockSpec((N, tc, tl_apply), lambda c, l: (0, c, l)),
        ),
        compiler_params=pltpu.CompilerParams(
            dimension_semantics=("parallel", "parallel"),
            vmem_limit_bytes=vmem_limit,
        ),
    )(x3, scale, bias, a2)


# ----------------------------------------------------------------------------
# Dispatch / tiling heuristics + wrapper
# ----------------------------------------------------------------------------
def br_forward(x, gamma, beta, alpha, *,
               single_pass_budget_bytes=None,
               apply_tile_bytes=None,
               stats_tile_bytes=None):
    """BatchNorm2d (training-mode batch stats, eps=1e-3) + per-channel PReLU.

    x: [N, C, H, W]; gamma/beta/alpha: [C].
    """
    N, C, H, W = x.shape
    L = H * W

    vmem_limit = _vmem_limit_bytes()
    # Single-pass block budget: block + 2x double-buffered in + 2x out + ~3x temps.
    if single_pass_budget_bytes is None:
        single_pass_budget_bytes = vmem_limit // 8
    # Apply pass: 2x in + 2x out + ~2x temps per block.
    if apply_tile_bytes is None:
        apply_tile_bytes = vmem_limit // 8
    # Stats pass has no per-step output blocks -> bigger spatial tiles.
    if stats_tile_bytes is None:
        stats_tile_bytes = vmem_limit // 5

    # Free layout change (no HBM data movement): NCHW -> (N, C, H*W).
    x3 = x.reshape(N, C, L)
    g2 = gamma.reshape(C, 1).astype(jnp.float32)
    b2 = beta.reshape(C, 1).astype(jnp.float32)
    a2 = alpha.reshape(C, 1).astype(jnp.float32)

    min_tc = _min_channel_tile(x.dtype)
    cands = _channel_tile_candidates(C, min_tc)

    def block_bytes(tc, tl):
        return N * tc * tl * 4  # f32 compute footprint per block

    # --- Prefer the single fused pass (1 read + 1 write vs 2 reads + 1 write). ---
    feasible = [t for t in cands if block_bytes(t, L) <= single_pass_budget_bytes]
    if feasible:
        tc = max(feasible)
        # v7x megacore: prefer >=2 parallel grid steps if blocks stay >=1 MiB.
        if C // tc < 2:
            two_step = [t for t in feasible
                        if C // t >= 2 and block_bytes(t, L) >= (1 << 20)]
            if two_step:
                tc = max(two_step)
        out3 = _br_single_pass(x3, g2, b2, a2, tc)
        return out3.reshape(N, C, H, W)

    # --- Two-pass path: tc sized so a 128-lane block fits the apply budget. ---
    tl_min = min(L, 128)
    feas2 = [t for t in cands if block_bytes(t, tl_min) <= apply_tile_bytes]
    if not feas2:
        feas2 = [min(cands)]
    # Prefer >=2 channel steps (stats pass parallel axis) when possible.
    par2 = [t for t in feas2 if C // t >= 2]
    tc = max(par2) if par2 else max(feas2)

    tl_stats = _pick_spatial_tile(N, tc, L, stats_tile_bytes)
    tl_apply = _pick_spatial_tile(N, tc, L, apply_tile_bytes)
    out3 = _br_two_pass(x3, g2, b2, a2, tc, tl_stats, tl_apply)
    return out3.reshape(N, C, H, W)


def _reference(x, gamma, beta, alpha):
    mean = jnp.mean(x, axis=(0, 2, 3), keepdims=True)
    var = jnp.mean((x - mean) ** 2, axis=(0, 2, 3), keepdims=True)
    y = (x - mean) / jnp.sqrt(var + EPS)
    y = y * gamma[None, :, None, None] + beta[None, :, None, None]
    return jnp.where(y >= 0, y, alpha[None, :, None, None] * y)


if __name__ == "__main__":
    key = jax.random.PRNGKey(0)
    keys = jax.random.split(key, 9)

    # --- Test 1: small module-sized input (single fused-pass path) ---
    N, C, H, W = 2, 4, 16, 16
    x = jax.random.normal(keys[0], (N, C, H, W), dtype=jnp.float32)
    gamma = 1.0 + 0.1 * jax.random.normal(keys[1], (C,), dtype=jnp.float32)
    beta = 0.1 * jax.random.normal(keys[2], (C,), dtype=jnp.float32)
    alpha = jnp.full((C,), 0.25, dtype=jnp.float32)

    out = br_forward(x, gamma, beta, alpha)
    jax.block_until_ready(out)
    ref = _reference(x, gamma, beta, alpha)
    assert out.shape == (N, C, H, W)
    assert jnp.allclose(out, ref, atol=1e-4, rtol=1e-4)

    # --- Test 2: force the two-phase path with ragged spatial tails ---
    N2, C2, H2, W2 = 2, 16, 24, 24            # L = 576
    x2 = jax.random.normal(keys[3], (N2, C2, H2, W2), dtype=jnp.float32)
    gamma2 = 1.0 + 0.1 * jax.random.normal(keys[4], (C2,), dtype=jnp.float32)
    beta2 = 0.1 * jax.random.normal(keys[5], (C2,), dtype=jnp.float32)
    alpha2 = jnp.full((C2,), 0.25, dtype=jnp.float32)

    out2 = br_forward(x2, gamma2, beta2, alpha2,
                      single_pass_budget_bytes=0,   # force two-phase reduction
                      stats_tile_bytes=16 * 1024,   # tl_stats = 256 -> ragged tail
                      apply_tile_bytes=32 * 1024)   # tl_apply = 512 -> ragged tail
    jax.block_until_ready(out2)
    ref2 = _reference(x2, gamma2, beta2, alpha2)
    assert jnp.allclose(out2, ref2, atol=1e-4, rtol=1e-4)

    # --- Test 3: two-phase path with evenly dividing spatial tiles (no mask) ---
    N3, C3, H3, W3 = 2, 8, 16, 16             # L = 256
    x3 = jax.random.normal(keys[6], (N3, C3, H3, W3), dtype=jnp.float32)
    gamma3 = 1.0 + 0.1 * jax.random.normal(keys[7], (C3,), dtype=jnp.float32)
    beta3 = 0.1 * jax.random.normal(keys[8], (C3,), dtype=jnp.float32)
    alpha3 = jnp.full((C3,), 0.25, dtype=jnp.float32)

    out3 = br_forward(x3, gamma3, beta3, alpha3,
                      single_pass_budget_bytes=0,
                      stats_tile_bytes=8 * 1024,    # tl = 128, divides L
                      apply_tile_bytes=8 * 1024)
    jax.block_until_ready(out3)
    ref3 = _reference(x3, gamma3, beta3, alpha3)
    assert jnp.allclose(out3, ref3, atol=1e-4, rtol=1e-4)

    print("KERNEL_OK")
</pallas_src>

<mosaic_0001>
module attributes {stable_mosaic.version = 11 : i64} {
  func.func @_br_fused_kernel(%arg0: i32, %arg1: memref<2x4x256xf32, #tpu.memory_space<vmem>>, %arg2: memref<4x1xf32, #tpu.memory_space<vmem>>, %arg3: memref<4x1xf32, #tpu.memory_space<vmem>>, %arg4: memref<4x1xf32, #tpu.memory_space<vmem>>, %arg5: memref<2x4x256xf32, #tpu.memory_space<vmem>>) attributes {dimension_semantics = [#tpu.dimension_semantics<parallel>], iteration_bounds = array<i64: 1>, scalar_prefetch = 0 : i64, scratch_operands = 0 : i64, tpu.core_type = #tpu.core_type<tc>, window_params = [{transform_indices = @transform_0, window_bounds = array<i64: 2, 4, 256>}, {transform_indices = @transform_1, window_bounds = array<i64: 4, 1>}, {transform_indices = @transform_2, window_bounds = array<i64: 4, 1>}, {transform_indices = @transform_3, window_bounds = array<i64: 4, 1>}, {transform_indices = @transform_4, window_bounds = array<i64: 2, 4, 256>}]} {
    %c0 = arith.constant 0 : index
    %c0_0 = arith.constant 0 : index
    %c0_1 = arith.constant 0 : index
    %0 = vector.load %arg1[%c0, %c0_0, %c0_1] : memref<2x4x256xf32, #tpu.memory_space<vmem>>, vector<2x4x256xf32>
    %cst = arith.constant dense<0.000000e+00> : vector<4x256xf32>
    %1 = vector.multi_reduction <add>, %0, %cst [0] : vector<2x4x256xf32> to vector<4x256xf32>
    %cst_2 = arith.constant dense<0.000000e+00> : vector<4xf32>
    %2 = vector.multi_reduction <add>, %1, %cst_2 [1] : vector<4x256xf32> to vector<4xf32>
    %3 = vector.shape_cast %2 : vector<4xf32> to vector<4x1xf32>
    %4 = arith.mulf %0, %0 : vector<2x4x256xf32>
    %cst_3 = arith.constant dense<0.000000e+00> : vector<4x256xf32>
    %5 = vector.multi_reduction <add>, %4, %cst_3 [0] : vector<2x4x256xf32> to vector<4x256xf32>
    %cst_4 = arith.constant dense<0.000000e+00> : vector<4xf32>
    %6 = vector.multi_reduction <add>, %5, %cst_4 [1] : vector<4x256xf32> to vector<4xf32>
    %7 = vector.shape_cast %6 : vector<4xf32> to vector<4x1xf32>
    %cst_5 = arith.constant 0.001953125 : f32
    %8 = vector.broadcast %cst_5 : f32 to vector<4x1xf32>
    %9 = arith.mulf %3, %8 : vector<4x1xf32>
    %cst_6 = arith.constant 0.001953125 : f32
    %10 = vector.broadcast %cst_6 : f32 to vector<4x1xf32>
    %11 = arith.mulf %7, %10 : vector<4x1xf32>
    %12 = arith.mulf %9, %9 : vector<4x1xf32>
    %13 = arith.subf %11, %12 : vector<4x1xf32>
    %cst_7 = arith.constant 0.000000e+00 : f32
    %14 = vector.broadcast %cst_7 : f32 to vector<4x1xf32>
    %15 = arith.maximumf %13, %14 : vector<4x1xf32>
    %cst_8 = arith.constant 1.000000e-03 : f32
    %16 = vector.broadcast %cst_8 : f32 to vector<4x1xf32>
    %17 = arith.addf %15, %16 : vector<4x1xf32>
    %18 = math.rsqrt %17 : vector<4x1xf32>
    %c0_9 = arith.constant 0 : index
    %c0_10 = arith.constant 0 : index
    %19 = vector.load %arg2[%c0_9, %c0_10] : memref<4x1xf32, #tpu.memory_space<vmem>>, vector<4x1xf32>
    %20 = arith.mulf %19, %18 : vector<4x1xf32>
    %c0_11 = arith.constant 0 : index
    %c0_12 = arith.constant 0 : index
    %21 = vector.load %arg3[%c0_11, %c0_12] : memref<4x1xf32, #tpu.memory_space<vmem>>, vector<4x1xf32>
    %22 = arith.mulf %9, %20 : vector<4x1xf32>
    %23 = arith.subf %21, %22 : vector<4x1xf32>
    %24 = vector.shape_cast %20 : vector<4x1xf32> to vector<1x4x1xf32>
    %25 = vector.broadcast %24 : vector<1x4x1xf32> to vector<2x4x256xf32>
    %26 = arith.mulf %0, %25 : vector<2x4x256xf32>
    %27 = vector.shape_cast %23 : vector<4x1xf32> to vector<1x4x1xf32>
    %28 = vector.broadcast %27 : vector<1x4x1xf32> to vector<2x4x256xf32>
    %29 = arith.addf %26, %28 : vector<2x4x256xf32>
    %cst_13 = arith.constant 0.000000e+00 : f32
    %30 = vector.broadcast %cst_13 : f32 to vector<2x4x256xf32>
    %31 = arith.cmpf oge, %29, %30 : vector<2x4x256xf32>
    %c0_14 = arith.constant 0 : index
    %c0_15 = arith.constant 0 : index
    %32 = vector.load %arg4[%c0_14, %c0_15] : memref<4x1xf32, #tpu.memory_space<vmem>>, vector<4x1xf32>
    %33 = vector.shape_cast %32 : vector<4x1xf32> to vector<1x4x1xf32>
    %34 = vector.broadcast %33 : vector<1x4x1xf32> to vector<2x4x256xf32>
    %35 = arith.mulf %34, %29 : vector<2x4x256xf32>
    %36 = arith.select %31, %29, %35 : vector<2x4x256xi1>, vector<2x4x256xf32>
    %c0_16 = arith.constant 0 : index
    %c0_17 = arith.constant 0 : index
    %c0_18 = arith.constant 0 : index
    %37 = vector.load %arg5[%c0_16, %c0_17, %c0_18] : memref<2x4x256xf32, #tpu.memory_space<vmem>>, vector<2x4x256xf32>
    tpu.vector_store %arg5[%c0_16, %c0_17, %c0_18], %36 {strides = array<i32>} : memref<2x4x256xf32, #tpu.memory_space<vmem>>, vector<2x4x256xf32>,
    return
  }
  func.func @transform_0(%arg0: i32) -> (i32, i32, i32) {
    %c0_i32 = arith.constant 0 : i32
    %c0_i32_0 = arith.constant 0 : i32
    %c0_i32_1 = arith.constant 0 : i32
    return %c0_i32, %arg0, %c0_i32_0 : i32, i32, i32
  }
  func.func @transform_1(%arg0: i32) -> (i32, i32) {
    %c0_i32 = arith.constant 0 : i32
    %c0_i32_0 = arith.constant 0 : i32
    return %arg0, %c0_i32 : i32, i32
  }
  func.func @transform_2(%arg0: i32) -> (i32, i32) {
    %c0_i32 = arith.constant 0 : i32
    %c0_i32_0 = arith.constant 0 : i32
    return %arg0, %c0_i32 : i32, i32
  }
  func.func @transform_3(%arg0: i32) -> (i32, i32) {
    %c0_i32 = arith.constant 0 : i32
    %c0_i32_0 = arith.constant 0 : i32
    return %arg0, %c0_i32 : i32, i32
  }
  func.func @transform_4(%arg0: i32) -> (i32, i32, i32) {
    %c0_i32 = arith.constant 0 : i32
    %c0_i32_0 = arith.constant 0 : i32
    %c0_i32_1 = arith.constant 0 : i32
    return %c0_i32, %arg0, %c0_i32_0 : i32, i32, i32
  }
}

</mosaic_0001>

<llo_original>
// kernel: tpu_custom_call.1
$region0: #{tpu_custom_call.1}
  #allocation0 [shape = 'u32[]', space=smem, size = 0x4, offset = 0x4, fixed_abs, tag = 'smem constant byte address 0x4 - core index']
  #allocation1 [shape = 'u32[144,128]{1,0:T(1,128)}', space=vmem, size = 0x12000, scoped, tag = 'internal scratch']
  %s0 = inlined_call_operand.hbm [shape: f32[2,4,256], index: 0, kind: input, shape index: {}]
  %s1 = inlined_call_operand.vmem [shape: f32[4,1], index: 1, kind: input, shape index: {}]
  %s2 = inlined_call_operand.vmem [shape: f32[4,1], index: 2, kind: input, shape index: {}]
  %s3 = inlined_call_operand.vmem [shape: f32[4,1], index: 3, kind: input, shape index: {}]
  %s4 = inlined_call_operand.hbm [shape: f32[2,4,256], index: 4, kind: output, shape index: {}]
  %s5 = sld [smem:[#allocation0]]
  $region30: #{tpu_custom_call.1} parent=0
    _
  %s7 = ssub.s32 1, %s5
  %s8 = scalar_select 0, %s7, %s5
  $region1: #{tpu_custom_call.1} parent=0
    #allocation2 [shape = 'u8[8192]{0}', space=vmem, size = 0x2000, scoped, tag = 'input window, operand 0, single buffered']
    #allocation3 [shape = 's32[1]{0}', space=sflag, size = 0x4, scoped, tag = 'scoped memory for tpu_custom_call.1']
    #allocation4 [shape = 's32[1]{0}', space=sflag, size = 0x4, scoped, tag = 'scoped memory for tpu_custom_call.1']
    #allocation5 [shape = 'u8[8192]{0}', space=vmem, size = 0x2000, scoped, tag = 'output window, operand 0, single buffered']
    %9 = vsyncpa [#allocation3], 0
    %10 = vsyncpa [#allocation4], 0
    // Predicated region
    $region2: #{tpu_custom_call.1} parent=1 // pred_check
      _
    $region3: #{tpu_custom_call.1} parent=1 // pred_check_branch
      %12 = sbr.rel (0) target = $region5
    $region4: #{tpu_custom_call.1} parent=1 // pred_region
      %s14 = ssub.s32 256, 256
      %15 = vsyncadd [#allocation3], %s14
      %s16 = sshll.u32 [#allocation2], 4
      %s17 = int_to_ptr.vmem [resolvable:$true] %s16
      %22 = dma.hbm_to_vmem [thread:$0]  %s0, 256, %s17, [#allocation3], 128, 128, 8
    $region5: #{tpu_custom_call.1} parent=1 // pred_fallthru
      _
    // Predicated region
    $region6: #{tpu_custom_call.1} parent=1 // pred_check
      _
    $region7: #{tpu_custom_call.1} parent=1 // pred_check_branch
      %24 = sbr.rel (0) target = $region9
    $region8: #{tpu_custom_call.1} parent=1 // pred_region
      _
    $region9: #{tpu_custom_call.1} parent=1 // pred_fallthru
      _
    // Predicated region
    $region10: #{tpu_custom_call.1} parent=1 // pred_check
      _
    $region11: #{tpu_custom_call.1} parent=1 // pred_check_branch
      %26 = sbr.rel (0) target = $region13
    $region12: #{tpu_custom_call.1} parent=1 // pred_region
      _
    $region13: #{tpu_custom_call.1} parent=1 // pred_fallthru
      _
    // Predicated region
    $region14: #{tpu_custom_call.1} parent=1 // pred_check
      _
    $region15: #{tpu_custom_call.1} parent=1 // pred_check_branch
      %28 = sbr.rel (0) target = $region17
    $region16: #{tpu_custom_call.1} parent=1 // pred_region
      _
    $region17: #{tpu_custom_call.1} parent=1 // pred_fallthru
      _
    // Predicated region
    $region18: #{tpu_custom_call.1} parent=1 // pred_check
      _
    $region19: #{tpu_custom_call.1} parent=1 // pred_check_branch
      %30 = sbr.rel (0) target = $region21
    $region20: #{tpu_custom_call.1} parent=1 // pred_region
      %31 = dma.done [#allocation3], 256
    $region21: #{tpu_custom_call.1} parent=1 // pred_fallthru
      _
    %v32 = vld [vmem:[#allocation2] sm:$0xff]
    %v33 = vld [vmem:[#allocation2 + $0x8] sm:$0xff]
    %v36 = vcombine.high %v32, %v32
    %v37 = vcombine.high %v33, %v33
    %vm40 = vcmask 1043456
    %v41 = vsel %vm40, %v32, 0.0
    %v42 = vsel %vm40, %v33, 0.0
    %v43 = vadd.f32 %v41, %v42
    %v44 = vsel %vm40, %v36, 0.0
    %v45 = vsel %vm40, %v37, 0.0
    %v46 = vadd.f32 %v44, %v45
    %v47 = vsel %vm40, %v43, 0.0
    %v48 = vsel %vm40, %v46, 0.0
    %v49 = vadd.f32 %v47, %v48
    %50 = vadd.xlane.f32.xlu0 %v49
    %v51 = vpop.xlane.xlu0 %50
    %v52 = vmul.f32 %v32, %v32
    %v53 = vmul.f32 %v33, %v33
    %v56 = vcombine.high %v52, %v52
    %v57 = vcombine.high %v53, %v53
    %v60 = vsel %vm40, %v52, 0.0
    %v61 = vsel %vm40, %v53, 0.0
    %v62 = vadd.f32 %v60, %v61
    %v63 = vsel %vm40, %v56, 0.0
    %v64 = vsel %vm40, %v57, 0.0
    %v65 = vadd.f32 %v63, %v64
    %v66 = vsel %vm40, %v62, 0.0
    %v67 = vsel %vm40, %v65, 0.0
    %v68 = vadd.f32 %v66, %v67
    %69 = vadd.xlane.f32.xlu0 %v68
    %v70 = vpop.xlane.xlu0 %69
    %v71 = vmul.f32 %v51, 0.001953125
    %v72 = vmul.f32 %v70, 0.001953125
    %v73 = vmul.f32 %v71, %v71
    %v74 = vsub.f32 %v72, %v73
    %v75 = vmax.f32 %v74, 0.0
    %v76 = vadd.f32 %v75, 0.001
    %v77 = vrsqrt.pop %v76
    %v78 = vld [vmem:[%s1] sm:$0xf]
    %v79 = vmul.f32 %v78, %v77
    %v80 = vld [vmem:[%s2] sm:$0xf]
    %v81 = vmul.f32 %v71, %v79
    %v82 = vsub.f32 %v80, %v81
    %84 = vset.pattern.permute.xlu0 0
    %85 = vperm.xlu0 %84, %v79
    %v86 = vpop.permute.xlu0 %85
    %v88 = vunpack.c.l.s4 839922192
    %v89 = vunpack.c.0.s8 %v88
    %v90 = vlaneseq
    %v91 = vshrl.u32 %v90, 7
    %v92 = vsub.s32 %v89, %v91
    %v93 = vrot.slane %v86, %v92
    %v95 = vmul.f32 %v32, %v93
    %v96 = vmul.f32 %v33, %v93
    %98 = vset.pattern.permute.xlu0 0
    %99 = vperm.xlu0 %98, %v82
    %v100 = vpop.permute.xlu0 %99
    %v102 = vunpack.c.l.s4 839922192
    %v103 = vunpack.c.0.s8 %v102
    %v104 = vlaneseq
    %v105 = vshrl.u32 %v104, 7
    %v106 = vsub.s32 %v103, %v105
    %v107 = vrot.slane %v100, %v106
    %v109 = vadd.f32 %v95, %v107
    %v110 = vadd.f32 %v96, %v107
    %vm111 = vcmp.ge.f32.partialorder %v109, 0.0
    %vm112 = vcmp.ge.f32.partialorder %v110, 0.0
    %v113 = vld [vmem:[%s3] sm:$0xf]
    %115 = vset.pattern.permute.xlu0 0
    %116 = vperm.xlu0 %115, %v113
    %v117 = vpop.permute.xlu0 %116
    %v121 = vcombine.high %v109, %v109
    %v122 = vcombine.high %v110, %v110
    %v125 = vmul.f32 %v117, %v109
    %v126 = vmul.f32 %v117, %v121
    %v127 = vmul.f32 %v117, %v110
    %v128 = vmul.f32 %v117, %v122
    %v133 = vcombine.low %v125, %v126
    %v134 = vcombine.low %v127, %v128
    %v137 = vsel %vm111, %v109, %v133
    %v138 = vsel %vm112, %v110, %v134
    %139 = vst [vmem:[#allocation5] sm:$0xff] %v137
    %140 = vst [vmem:[#allocation5 + $0x8] sm:$0xff] %v138
    // Predicated region
    $region22: #{tpu_custom_call.1} parent=1 // pred_check
      _
    $region23: #{tpu_custom_call.1} parent=1 // pred_check_branch
      %142 = sbr.rel (0) target = $region25
    $region24: #{tpu_custom_call.1} parent=1 // pred_region
      %s144 = ssub.s32 256, 256
      %145 = vsyncadd [#allocation4], %s144
      %s146 = sshll.u32 [#allocation5], 4
      %s147 = int_to_ptr.vmem [resolvable:$true] %s146
      %152 = dma.vmem_to_hbm [thread:$0]  %s147, 256, %s4, [#allocation4], 128, 128, 8
    $region25: #{tpu_custom_call.1} parent=1 // pred_fallthru
      _
    // Predicated region
    $region26: #{tpu_custom_call.1} parent=1 // pred_check
      _
    $region27: #{tpu_custom_call.1} parent=1 // pred_check_branch
      %154 = sbr.rel (0) target = $region29
    $region28: #{tpu_custom_call.1} parent=1 // pred_region
      %155 = dma.done [#allocation4], 256
    $region29: #{tpu_custom_call.1} parent=1 // pred_fallthru
      _
    %156 = vsyncpa [#allocation3], 1
    %157 = vsyncpa [#allocation4], 1

</llo_original>
